<compile_context>
chip_gen: v5e
topology: v5e:2x2
jax: 0.10.0
libtpu: 0.0.40
codegen_flags: <defaults>
</compile_context>

<pallas_src>
import functools
import math

import jax
import jax.numpy as jnp
from jax.experimental import pallas as pl
from jax.experimental.pallas import tpu as pltpu


LN_EPS = 1e-5  # PyTorch nn.LayerNorm default


def _gelu_exact(x):
    # PyTorch nn.GELU() default = exact erf-based GELU.
    return 0.5 * x * (1.0 + jax.lax.erf(x * (1.0 / math.sqrt(2.0))))


def _layernorm(x, gamma, beta):
    mu = jnp.mean(x, axis=-1, keepdims=True)
    var = jnp.mean((x - mu) ** 2, axis=-1, keepdims=True)  # biased, like torch
    return (x - mu) * jax.lax.rsqrt(var + LN_EPS) * gamma + beta


def sinusoidal_pos_emb(t, embedding_dim):
    """Plain-JAX glue replicating SinusoidalPosEmb.forward for t of shape [B]."""
    assert embedding_dim > 2, "SinusoidalPosEmb needs embedding_dim > 2"
    half_dim = embedding_dim // 2
    scale = math.log(10000.0) / (half_dim - 1)
    freqs = jnp.exp(jnp.arange(half_dim, dtype=jnp.float32) * (-scale))
    emb = t[:, None] * freqs[None, :]                             # [B, half]
    emb = jnp.concatenate([jnp.sin(emb), jnp.cos(emb)], axis=-1)  # [B, 2*half]
    return emb[:, :embedding_dim]                                 # [B, D]


# ----------------------------------------------------------------------------
# Kernel
# ----------------------------------------------------------------------------
def denoiser_kernel(
    x_t_ref, sin_ref, c_ref,
    wt1_ref, bt1_ref, wt2_ref, bt2_ref,
    w1x_ref, w1t_ref, w1c_ref, b1_ref,
    w2_ref, b2_ref,
    out_ref,
    *, d_true, d_pad, h_true, h_pad,
):
    f32 = jnp.float32
    x_t = x_t_ref[...]
    sin = sin_ref[...]
    c = c_ref[...]

    # ---- time MLP: Linear(D,D) -> GELU -> Linear(D,D) ----
    # (padded lanes of sin / weights / biases are zero -> t_emb padded lanes = 0)
    h = jnp.dot(sin, wt1_ref[...], preferred_element_type=f32) + bt1_ref[...]
    h = _gelu_exact(h)
    t_emb = jnp.dot(h, wt2_ref[...], preferred_element_type=f32) + bt2_ref[...]

    # ---- LayerNorm over the conceptual concat [x_t, t_emb, c] (width 3*d_true)
    # computed arithmetically over the three D-wide pieces (no concat).
    n1 = jnp.float32(3 * d_true)
    pad1 = jnp.float32(d_pad - d_true)          # zero padded lanes per piece
    s1 = (jnp.sum(x_t, -1, keepdims=True)
          + jnp.sum(t_emb, -1, keepdims=True)
          + jnp.sum(c, -1, keepdims=True))
    mu1 = s1 / n1
    ss1 = (jnp.sum((x_t - mu1) ** 2, -1, keepdims=True)
           + jnp.sum((t_emb - mu1) ** 2, -1, keepdims=True)
           + jnp.sum((c - mu1) ** 2, -1, keepdims=True)
           - 3.0 * pad1 * mu1 * mu1)            # remove padded-lane (0-mu)^2 terms
    r1 = jax.lax.rsqrt(ss1 / n1 + LN_EPS)

    # LN1 affine is folded into w1*/b1 host-side; padded rows of w1* are zero,
    # so the nonzero normalized padding lanes contribute nothing.
    hidden = (jnp.dot((x_t - mu1) * r1, w1x_ref[...], preferred_element_type=f32)
              + jnp.dot((t_emb - mu1) * r1, w1t_ref[...], preferred_element_type=f32)
              + jnp.dot((c - mu1) * r1, w1c_ref[...], preferred_element_type=f32)
              + b1_ref[...])
    hidden = jnp.maximum(hidden, 0.0)           # padded cols stay exactly 0

    # ---- LayerNorm(4D), affine folded into w2/b2 ----
    n2 = jnp.float32(h_true)
    pad2 = jnp.float32(h_pad - h_true)
    mu2 = jnp.sum(hidden, -1, keepdims=True) / n2
    ss2 = jnp.sum((hidden - mu2) ** 2, -1, keepdims=True) - pad2 * mu2 * mu2
    r2 = jax.lax.rsqrt(ss2 / n2 + LN_EPS)

    out = jnp.dot((hidden - mu2) * r2, w2_ref[...], preferred_element_type=f32) + b2_ref[...]
    out_ref[...] = out.astype(out_ref.dtype)


# ----------------------------------------------------------------------------
# Wrapper
# ----------------------------------------------------------------------------
def _round_up(x, m):
    return ((x + m - 1) // m) * m


def _pad2(a, rows, cols):
    a = a.astype(jnp.float32)
    return jnp.pad(a, ((0, rows - a.shape[0]), (0, cols - a.shape[1])))


def prepare_kernel_params(params, D):
    """Fold LN affine into the following matmuls, split w1 by concat piece,
    and zero-pad everything to 128-lane-aligned shapes."""
    Dp = _round_up(D, 128)
    Hp = _round_up(4 * D, 128)

    # LN1 fold: (xhat*g1 + be1) @ w1 == xhat @ (g1[:,None]*w1) + be1 @ w1
    g1 = params["g1"].reshape(3 * D, 1)
    be1 = params["be1"].reshape(1, 3 * D)
    w1 = params["w1"]
    w1_eff = w1 * g1
    b1_eff = params["b1"] + be1 @ w1
    w1x, w1t, w1c = w1_eff[:D], w1_eff[D:2 * D], w1_eff[2 * D:]

    # LN2 fold into w2/b2
    g2 = params["g2"].reshape(4 * D, 1)
    be2 = params["be2"].reshape(1, 4 * D)
    w2 = params["w2"]
    w2_eff = w2 * g2
    b2_eff = params["b2"] + be2 @ w2

    kp = dict(
        wt1=_pad2(params["wt1"], Dp, Dp), bt1=_pad2(params["bt1"], 1, Dp),
        wt2=_pad2(params["wt2"], Dp, Dp), bt2=_pad2(params["bt2"], 1, Dp),
        w1x=_pad2(w1x, Dp, Hp), w1t=_pad2(w1t, Dp, Hp), w1c=_pad2(w1c, Dp, Hp),
        b1=_pad2(b1_eff, 1, Hp),
        w2=_pad2(w2_eff, Hp, Dp), b2=_pad2(b2_eff, 1, Dp),
    )
    return kp, Dp, Hp


def ce_denoiser_block(x_t, t, c, params, *, block_b=128):
    B, D = x_t.shape
    kp, Dp, Hp = prepare_kernel_params(params, D)

    # Adaptive row tile: sublane-aligned (multiple of 8), never bigger than
    # needed for small batches, capped at block_b for pipelining large ones.
    TB = min(block_b, _round_up(max(B, 1), 8))
    Bp = _round_up(max(B, 1), TB)

    sin_emb = sinusoidal_pos_emb(t.astype(jnp.float32), D)
    x_t_p = _pad2(x_t, Bp, Dp)
    sin_p = _pad2(sin_emb, Bp, Dp)
    c_p = _pad2(c, Bp, Dp)

    act_spec = pl.BlockSpec((TB, Dp), lambda i: (i, 0))

    def wspec(shape):
        # Constant block index -> weight stays VMEM-resident across grid steps.
        return pl.BlockSpec(shape, lambda i: (0, 0))

    kernel = functools.partial(
        denoiser_kernel, d_true=D, d_pad=Dp, h_true=4 * D, h_pad=Hp)

    out_p = pl.pallas_call(
        kernel,
        out_shape=jax.ShapeDtypeStruct((Bp, Dp), jnp.float32),
        grid=(Bp // TB,),
        in_specs=[
            act_spec, act_spec, act_spec,                       # x_t, sin, c
            wspec((Dp, Dp)), wspec((1, Dp)),                    # wt1, bt1
            wspec((Dp, Dp)), wspec((1, Dp)),                    # wt2, bt2
            wspec((Dp, Hp)), wspec((Dp, Hp)), wspec((Dp, Hp)),  # w1x, w1t, w1c
            wspec((1, Hp)),                                     # b1
            wspec((Hp, Dp)), wspec((1, Dp)),                    # w2, b2
        ],
        out_specs=act_spec,
        compiler_params=pltpu.CompilerParams(
            dimension_semantics=("parallel",),
            vmem_limit_bytes=64 * 1024 * 1024,
        ),
    )(x_t_p, sin_p, c_p,
      kp["wt1"], kp["bt1"], kp["wt2"], kp["bt2"],
      kp["w1x"], kp["w1t"], kp["w1c"], kp["b1"],
      kp["w2"], kp["b2"])

    return out_p[:B, :D]


# ----------------------------------------------------------------------------
# Synthetic params + pure-JAX reference (mirrors the PyTorch forward)
# ----------------------------------------------------------------------------
def init_params(key, D):
    ks = jax.random.split(key, 8)

    def lin(k, fan_in, fan_out):
        bound = 1.0 / math.sqrt(fan_in)
        kw, kb = jax.random.split(k)
        w = jax.random.uniform(kw, (fan_in, fan_out), jnp.float32, -bound, bound)
        b = jax.random.uniform(kb, (1, fan_out), jnp.float32, -bound, bound)
        return w, b

    wt1, bt1 = lin(ks[0], D, D)          # time_mlp Linear #1
    wt2, bt2 = lin(ks[1], D, D)          # time_mlp Linear #2
    w1, b1 = lin(ks[2], 3 * D, 4 * D)    # mlp1
    w2, b2 = lin(ks[3], 4 * D, D)        # mlp2
    # Non-trivial LN affine so the host-side folding is actually exercised.
    g1 = 1.0 + 0.1 * jax.random.normal(ks[4], (1, 3 * D), jnp.float32)
    be1 = 0.1 * jax.random.normal(ks[5], (1, 3 * D), jnp.float32)
    g2 = 1.0 + 0.1 * jax.random.normal(ks[6], (1, 4 * D), jnp.float32)
    be2 = 0.1 * jax.random.normal(ks[7], (1, 4 * D), jnp.float32)
    return {
        "wt1": wt1, "bt1": bt1, "wt2": wt2, "bt2": bt2,
        "g1": g1, "be1": be1, "w1": w1, "b1": b1,
        "g2": g2, "be2": be2, "w2": w2, "b2": b2,
    }


def reference_forward(x_t, t, c, params):
    D = x_t.shape[-1]
    s = sinusoidal_pos_emb(t.astype(jnp.float32), D)
    h = _gelu_exact(s @ params["wt1"] + params["bt1"])
    t_emb = h @ params["wt2"] + params["bt2"]
    x = jnp.concatenate([x_t, t_emb, c], axis=-1)
    x = _layernorm(x, params["g1"], params["be1"])
    x = jnp.maximum(x @ params["w1"] + params["b1"], 0.0)
    x = _layernorm(x, params["g2"], params["be2"])
    return x @ params["w2"] + params["b2"]


if __name__ == "__main__":
    B, D = 8, 32  # embedding_dim = 32 -> concat dim 96, hidden 128
    key = jax.random.PRNGKey(0)
    k_x, k_t, k_c, k_p = jax.random.split(key, 4)

    x_t = jax.random.normal(k_x, (B, D), jnp.float32)
    t = jax.random.randint(k_t, (B,), 0, 1000).astype(jnp.float32)
    c = jax.random.normal(k_c, (B, D), jnp.float32)
    params = init_params(k_p, D)

    out = ce_denoiser_block(x_t, t, c, params)
    out = jax.block_until_ready(out)

    ref = reference_forward(x_t, t, c, params)
    assert out.shape == (B, D)
    err = float(jnp.max(jnp.abs(out - ref)))
    assert jnp.allclose(out, ref, atol=2e-4, rtol=2e-4), f"max abs err {err}"

    print("KERNEL_OK")
</pallas_src>

<mosaic_0001>
module attributes {stable_mosaic.version = 11 : i64} {
  func.func @denoiser_kernel(%arg0: i32, %arg1: memref<8x128xf32, #tpu.memory_space<vmem>>, %arg2: memref<8x128xf32, #tpu.memory_space<vmem>>, %arg3: memref<8x128xf32, #tpu.memory_space<vmem>>, %arg4: memref<128x128xf32, #tpu.memory_space<vmem>>, %arg5: memref<1x128xf32, #tpu.memory_space<vmem>>, %arg6: memref<128x128xf32, #tpu.memory_space<vmem>>, %arg7: memref<1x128xf32, #tpu.memory_space<vmem>>, %arg8: memref<128x128xf32, #tpu.memory_space<vmem>>, %arg9: memref<128x128xf32, #tpu.memory_space<vmem>>, %arg10: memref<128x128xf32, #tpu.memory_space<vmem>>, %arg11: memref<1x128xf32, #tpu.memory_space<vmem>>, %arg12: memref<128x128xf32, #tpu.memory_space<vmem>>, %arg13: memref<1x128xf32, #tpu.memory_space<vmem>>, %arg14: memref<8x128xf32, #tpu.memory_space<vmem>>) attributes {dimension_semantics = [#tpu.dimension_semantics<parallel>], iteration_bounds = array<i64: 1>, scalar_prefetch = 0 : i64, scratch_operands = 0 : i64, tpu.core_type = #tpu.core_type<tc>, window_params = [{transform_indices = @transform_0, window_bounds = array<i64: 8, 128>}, {transform_indices = @transform_1, window_bounds = array<i64: 8, 128>}, {transform_indices = @transform_2, window_bounds = array<i64: 8, 128>}, {pipeline_mode = #tpu.pipeline_mode<synchronous>, transform_indices = @transform_3, window_bounds = array<i64: 128, 128>}, {pipeline_mode = #tpu.pipeline_mode<synchronous>, transform_indices = @transform_4, window_bounds = array<i64: 1, 128>}, {pipeline_mode = #tpu.pipeline_mode<synchronous>, transform_indices = @transform_5, window_bounds = array<i64: 128, 128>}, {pipeline_mode = #tpu.pipeline_mode<synchronous>, transform_indices = @transform_6, window_bounds = array<i64: 1, 128>}, {pipeline_mode = #tpu.pipeline_mode<synchronous>, transform_indices = @transform_7, window_bounds = array<i64: 128, 128>}, {pipeline_mode = #tpu.pipeline_mode<synchronous>, transform_indices = @transform_8, window_bounds = array<i64: 128, 128>}, {pipeline_mode = #tpu.pipeline_mode<synchronous>, transform_indices = @transform_9, window_bounds = array<i64: 128, 128>}, {pipeline_mode = #tpu.pipeline_mode<synchronous>, transform_indices = @transform_10, window_bounds = array<i64: 1, 128>}, {pipeline_mode = #tpu.pipeline_mode<synchronous>, transform_indices = @transform_11, window_bounds = array<i64: 128, 128>}, {pipeline_mode = #tpu.pipeline_mode<synchronous>, transform_indices = @transform_12, window_bounds = array<i64: 1, 128>}, {transform_indices = @transform_13, window_bounds = array<i64: 8, 128>}]} {
    %c0 = arith.constant 0 : index
    %c0_0 = arith.constant 0 : index
    %0 = vector.load %arg1[%c0, %c0_0] : memref<8x128xf32, #tpu.memory_space<vmem>>, vector<8x128xf32>
    %c0_1 = arith.constant 0 : index
    %c0_2 = arith.constant 0 : index
    %1 = vector.load %arg2[%c0_1, %c0_2] : memref<8x128xf32, #tpu.memory_space<vmem>>, vector<8x128xf32>
    %c0_3 = arith.constant 0 : index
    %c0_4 = arith.constant 0 : index
    %2 = vector.load %arg3[%c0_3, %c0_4] : memref<8x128xf32, #tpu.memory_space<vmem>>, vector<8x128xf32>
    %c0_5 = arith.constant 0 : index
    %c0_6 = arith.constant 0 : index
    %3 = vector.load %arg4[%c0_5, %c0_6] : memref<128x128xf32, #tpu.memory_space<vmem>>, vector<128x128xf32>
    %cst = arith.constant dense<0.000000e+00> : vector<8x128xf32>
    %4 = tpu.matmul %1, %3, %cst {dimension_numbers = #tpu.dot_dimension_numbers<[1], [0], [0], [1], [0, 0, 1, 1], [], []>} : vector<8x128xf32>, vector<128x128xf32>, vector<8x128xf32> -> vector<8x128xf32>
    %c0_7 = arith.constant 0 : index
    %c0_8 = arith.constant 0 : index
    %5 = vector.load %arg5[%c0_7, %c0_8] : memref<1x128xf32, #tpu.memory_space<vmem>>, vector<1x128xf32>
    %6 = vector.broadcast %5 : vector<1x128xf32> to vector<8x128xf32>
    %7 = arith.addf %4, %6 : vector<8x128xf32>
    %cst_9 = arith.constant 5.000000e-01 : f32
    %8 = vector.broadcast %cst_9 : f32 to vector<8x128xf32>
    %9 = arith.mulf %8, %7 : vector<8x128xf32>
    %cst_10 = arith.constant 0.707106769 : f32
    %10 = vector.broadcast %cst_10 : f32 to vector<8x128xf32>
    %11 = arith.mulf %7, %10 : vector<8x128xf32>
    %12 = math.erf %11 : vector<8x128xf32>
    %cst_11 = arith.constant 1.000000e+00 : f32
    %13 = vector.broadcast %cst_11 : f32 to vector<8x128xf32>
    %14 = arith.addf %13, %12 : vector<8x128xf32>
    %15 = arith.mulf %9, %14 : vector<8x128xf32>
    %c0_12 = arith.constant 0 : index
    %c0_13 = arith.constant 0 : index
    %16 = vector.load %arg6[%c0_12, %c0_13] : memref<128x128xf32, #tpu.memory_space<vmem>>, vector<128x128xf32>
    %cst_14 = arith.constant dense<0.000000e+00> : vector<8x128xf32>
    %17 = tpu.matmul %15, %16, %cst_14 {dimension_numbers = #tpu.dot_dimension_numbers<[1], [0], [0], [1], [0, 0, 1, 1], [], []>} : vector<8x128xf32>, vector<128x128xf32>, vector<8x128xf32> -> vector<8x128xf32>
    %c0_15 = arith.constant 0 : index
    %c0_16 = arith.constant 0 : index
    %18 = vector.load %arg7[%c0_15, %c0_16] : memref<1x128xf32, #tpu.memory_space<vmem>>, vector<1x128xf32>
    %19 = vector.broadcast %18 : vector<1x128xf32> to vector<8x128xf32>
    %20 = arith.addf %17, %19 : vector<8x128xf32>
    %cst_17 = arith.constant dense<0.000000e+00> : vector<8xf32>
    %21 = vector.multi_reduction <add>, %0, %cst_17 [1] : vector<8x128xf32> to vector<8xf32>
    %22 = vector.shape_cast %21 : vector<8xf32> to vector<8x1xf32>
    %cst_18 = arith.constant dense<0.000000e+00> : vector<8xf32>
    %23 = vector.multi_reduction <add>, %20, %cst_18 [1] : vector<8x128xf32> to vector<8xf32>
    %24 = vector.shape_cast %23 : vector<8xf32> to vector<8x1xf32>
    %25 = arith.addf %22, %24 : vector<8x1xf32>
    %cst_19 = arith.constant dense<0.000000e+00> : vector<8xf32>
    %26 = vector.multi_reduction <add>, %2, %cst_19 [1] : vector<8x128xf32> to vector<8xf32>
    %27 = vector.shape_cast %26 : vector<8xf32> to vector<8x1xf32>
    %28 = arith.addf %25, %27 : vector<8x1xf32>
    %cst_20 = arith.constant 9.600000e+01 : f32
    %29 = vector.broadcast %cst_20 : f32 to vector<8x1xf32>
    %30 = arith.divf %28, %29 : vector<8x1xf32>
    %31 = vector.broadcast %30 : vector<8x1xf32> to vector<8x128xf32>
    %32 = arith.subf %0, %31 : vector<8x128xf32>
    %33 = arith.mulf %32, %32 : vector<8x128xf32>
    %cst_21 = arith.constant dense<0.000000e+00> : vector<8xf32>
    %34 = vector.multi_reduction <add>, %33, %cst_21 [1] : vector<8x128xf32> to vector<8xf32>
    %35 = vector.shape_cast %34 : vector<8xf32> to vector<8x1xf32>
    %36 = vector.broadcast %30 : vector<8x1xf32> to vector<8x128xf32>
    %37 = arith.subf %20, %36 : vector<8x128xf32>
    %38 = arith.mulf %37, %37 : vector<8x128xf32>
    %cst_22 = arith.constant dense<0.000000e+00> : vector<8xf32>
    %39 = vector.multi_reduction <add>, %38, %cst_22 [1] : vector<8x128xf32> to vector<8xf32>
    %40 = vector.shape_cast %39 : vector<8xf32> to vector<8x1xf32>
    %41 = arith.addf %35, %40 : vector<8x1xf32>
    %42 = vector.broadcast %30 : vector<8x1xf32> to vector<8x128xf32>
    %43 = arith.subf %2, %42 : vector<8x128xf32>
    %44 = arith.mulf %43, %43 : vector<8x128xf32>
    %cst_23 = arith.constant dense<0.000000e+00> : vector<8xf32>
    %45 = vector.multi_reduction <add>, %44, %cst_23 [1] : vector<8x128xf32> to vector<8xf32>
    %46 = vector.shape_cast %45 : vector<8xf32> to vector<8x1xf32>
    %47 = arith.addf %41, %46 : vector<8x1xf32>
    %cst_24 = arith.constant 3.000000e+00 : f32
    %cst_25 = arith.constant 9.600000e+01 : f32
    %48 = arith.mulf %cst_24, %cst_25 : f32
    %49 = vector.broadcast %48 : f32 to vector<8x1xf32>
    %50 = arith.mulf %49, %30 : vector<8x1xf32>
    %51 = arith.mulf %50, %30 : vector<8x1xf32>
    %52 = arith.subf %47, %51 : vector<8x1xf32>
    %cst_26 = arith.constant 9.600000e+01 : f32
    %53 = vector.broadcast %cst_26 : f32 to vector<8x1xf32>
    %54 = arith.divf %52, %53 : vector<8x1xf32>
    %cst_27 = arith.constant 9.99999974E-6 : f32
    %55 = vector.broadcast %cst_27 : f32 to vector<8x1xf32>
    %56 = arith.addf %54, %55 : vector<8x1xf32>
    %57 = math.rsqrt %56 : vector<8x1xf32>
    %58 = vector.broadcast %30 : vector<8x1xf32> to vector<8x128xf32>
    %59 = arith.subf %0, %58 : vector<8x128xf32>
    %60 = vector.broadcast %57 : vector<8x1xf32> to vector<8x128xf32>
    %61 = arith.mulf %59, %60 : vector<8x128xf32>
    %c0_28 = arith.constant 0 : index
    %c0_29 = arith.constant 0 : index
    %62 = vector.load %arg8[%c0_28, %c0_29] : memref<128x128xf32, #tpu.memory_space<vmem>>, vector<128x128xf32>
    %cst_30 = arith.constant dense<0.000000e+00> : vector<8x128xf32>
    %63 = tpu.matmul %61, %62, %cst_30 {dimension_numbers = #tpu.dot_dimension_numbers<[1], [0], [0], [1], [0, 0, 1, 1], [], []>} : vector<8x128xf32>, vector<128x128xf32>, vector<8x128xf32> -> vector<8x128xf32>
    %64 = vector.broadcast %30 : vector<8x1xf32> to vector<8x128xf32>
    %65 = arith.subf %20, %64 : vector<8x128xf32>
    %66 = vector.broadcast %57 : vector<8x1xf32> to vector<8x128xf32>
    %67 = arith.mulf %65, %66 : vector<8x128xf32>
    %c0_31 = arith.constant 0 : index
    %c0_32 = arith.constant 0 : index
    %68 = vector.load %arg9[%c0_31, %c0_32] : memref<128x128xf32, #tpu.memory_space<vmem>>, vector<128x128xf32>
    %cst_33 = arith.constant dense<0.000000e+00> : vector<8x128xf32>
    %69 = tpu.matmul %67, %68, %cst_33 {dimension_numbers = #tpu.dot_dimension_numbers<[1], [0], [0], [1], [0, 0, 1, 1], [], []>} : vector<8x128xf32>, vector<128x128xf32>, vector<8x128xf32> -> vector<8x128xf32>
    %70 = arith.addf %63, %69 : vector<8x128xf32>
    %71 = vector.broadcast %30 : vector<8x1xf32> to vector<8x128xf32>
    %72 = arith.subf %2, %71 : vector<8x128xf32>
    %73 = vector.broadcast %57 : vector<8x1xf32> to vector<8x128xf32>
    %74 = arith.mulf %72, %73 : vector<8x128xf32>
    %c0_34 = arith.constant 0 : index
    %c0_35 = arith.constant 0 : index
    %75 = vector.load %arg10[%c0_34, %c0_35] : memref<128x128xf32, #tpu.memory_space<vmem>>, vector<128x128xf32>
    %cst_36 = arith.constant dense<0.000000e+00> : vector<8x128xf32>
    %76 = tpu.matmul %74, %75, %cst_36 {dimension_numbers = #tpu.dot_dimension_numbers<[1], [0], [0], [1], [0, 0, 1, 1], [], []>} : vector<8x128xf32>, vector<128x128xf32>, vector<8x128xf32> -> vector<8x128xf32>
    %77 = arith.addf %70, %76 : vector<8x128xf32>
    %c0_37 = arith.constant 0 : index
    %c0_38 = arith.constant 0 : index
    %78 = vector.load %arg11[%c0_37, %c0_38] : memref<1x128xf32, #tpu.memory_space<vmem>>, vector<1x128xf32>
    %79 = vector.broadcast %78 : vector<1x128xf32> to vector<8x128xf32>
    %80 = arith.addf %77, %79 : vector<8x128xf32>
    %cst_39 = arith.constant 0.000000e+00 : f32
    %81 = vector.broadcast %cst_39 : f32 to vector<8x128xf32>
    %82 = arith.maximumf %80, %81 : vector<8x128xf32>
    %cst_40 = arith.constant dense<0.000000e+00> : vector<8xf32>
    %83 = vector.multi_reduction <add>, %82, %cst_40 [1] : vector<8x128xf32> to vector<8xf32>
    %84 = vector.shape_cast %83 : vector<8xf32> to vector<8x1xf32>
    %cst_41 = arith.constant 1.280000e+02 : f32
    %85 = vector.broadcast %cst_41 : f32 to vector<8x1xf32>
    %86 = arith.divf %84, %85 : vector<8x1xf32>
    %87 = vector.broadcast %86 : vector<8x1xf32> to vector<8x128xf32>
    %88 = arith.subf %82, %87 : vector<8x128xf32>
    %89 = arith.mulf %88, %88 : vector<8x128xf32>
    %cst_42 = arith.constant dense<0.000000e+00> : vector<8xf32>
    %90 = vector.multi_reduction <add>, %89, %cst_42 [1] : vector<8x128xf32> to vector<8xf32>
    %91 = vector.shape_cast %90 : vector<8xf32> to vector<8x1xf32>
    %cst_43 = arith.constant 0.000000e+00 : f32
    %92 = vector.broadcast %cst_43 : f32 to vector<8x1xf32>
    %93 = arith.mulf %92, %86 : vector<8x1xf32>
    %94 = arith.mulf %93, %86 : vector<8x1xf32>
    %95 = arith.subf %91, %94 : vector<8x1xf32>
    %cst_44 = arith.constant 1.280000e+02 : f32
    %96 = vector.broadcast %cst_44 : f32 to vector<8x1xf32>
    %97 = arith.divf %95, %96 : vector<8x1xf32>
    %cst_45 = arith.constant 9.99999974E-6 : f32
    %98 = vector.broadcast %cst_45 : f32 to vector<8x1xf32>
    %99 = arith.addf %97, %98 : vector<8x1xf32>
    %100 = math.rsqrt %99 : vector<8x1xf32>
    %101 = vector.broadcast %86 : vector<8x1xf32> to vector<8x128xf32>
    %102 = arith.subf %82, %101 : vector<8x128xf32>
    %103 = vector.broadcast %100 : vector<8x1xf32> to vector<8x128xf32>
    %104 = arith.mulf %102, %103 : vector<8x128xf32>
    %c0_46 = arith.constant 0 : index
    %c0_47 = arith.constant 0 : index
    %105 = vector.load %arg12[%c0_46, %c0_47] : memref<128x128xf32, #tpu.memory_space<vmem>>, vector<128x128xf32>
    %cst_48 = arith.constant dense<0.000000e+00> : vector<8x128xf32>
    %106 = tpu.matmul %104, %105, %cst_48 {dimension_numbers = #tpu.dot_dimension_numbers<[1], [0], [0], [1], [0, 0, 1, 1], [], []>} : vector<8x128xf32>, vector<128x128xf32>, vector<8x128xf32> -> vector<8x128xf32>
    %c0_49 = arith.constant 0 : index
    %c0_50 = arith.constant 0 : index
    %107 = vector.load %arg13[%c0_49, %c0_50] : memref<1x128xf32, #tpu.memory_space<vmem>>, vector<1x128xf32>
    %108 = vector.broadcast %107 : vector<1x128xf32> to vector<8x128xf32>
    %109 = arith.addf %106, %108 : vector<8x128xf32>
    %c0_51 = arith.constant 0 : index
    %c0_52 = arith.constant 0 : index
    %110 = vector.load %arg14[%c0_51, %c0_52] : memref<8x128xf32, #tpu.memory_space<vmem>>, vector<8x128xf32>
    tpu.vector_store %arg14[%c0_51, %c0_52], %109 {strides = array<i32>} : memref<8x128xf32, #tpu.memory_space<vmem>>, vector<8x128xf32>,
    return
  }
  func.func @transform_0(%arg0: i32) -> (i32, i32) {
    %c0_i32 = arith.constant 0 : i32
    %c0_i32_0 = arith.constant 0 : i32
    return %arg0, %c0_i32 : i32, i32
  }
  func.func @transform_1(%arg0: i32) -> (i32, i32) {
    %c0_i32 = arith.constant 0 : i32
    %c0_i32_0 = arith.constant 0 : i32
    return %arg0, %c0_i32 : i32, i32
  }
  func.func @transform_2(%arg0: i32) -> (i32, i32) {
    %c0_i32 = arith.constant 0 : i32
    %c0_i32_0 = arith.constant 0 : i32
    return %arg0, %c0_i32 : i32, i32
  }
  func.func @transform_3(%arg0: i32) -> (i32, i32) {
    %c0_i32 = arith.constant 0 : i32
    %c0_i32_0 = arith.constant 0 : i32
    %c0_i32_1 = arith.constant 0 : i32
    return %c0_i32, %c0_i32_0 : i32, i32
  }
  func.func @transform_4(%arg0: i32) -> (i32, i32) {
    %c0_i32 = arith.constant 0 : i32
    %c0_i32_0 = arith.constant 0 : i32
    %c0_i32_1 = arith.constant 0 : i32
    return %c0_i32, %c0_i32_0 : i32, i32
  }
  func.func @transform_5(%arg0: i32) -> (i32, i32) {
    %c0_i32 = arith.constant 0 : i32
    %c0_i32_0 = arith.constant 0 : i32
    %c0_i32_1 = arith.constant 0 : i32
    return %c0_i32, %c0_i32_0 : i32, i32
  }
  func.func @transform_6(%arg0: i32) -> (i32, i32) {
    %c0_i32 = arith.constant 0 : i32
    %c0_i32_0 = arith.constant 0 : i32
    %c0_i32_1 = arith.constant 0 : i32
    return %c0_i32, %c0_i32_0 : i32, i32
  }
  func.func @transform_7(%arg0: i32) -> (i32, i32) {
    %c0_i32 = arith.constant 0 : i32
    %c0_i32_0 = arith.constant 0 : i32
    %c0_i32_1 = arith.constant 0 : i32
    return %c0_i32, %c0_i32_0 : i32, i32
  }
  func.func @transform_8(%arg0: i32) -> (i32, i32) {
    %c0_i32 = arith.constant 0 : i32
    %c0_i32_0 = arith.constant 0 : i32
    %c0_i32_1 = arith.constant 0 : i32
    return %c0_i32, %c0_i32_0 : i32, i32
  }
  func.func @transform_9(%arg0: i32) -> (i32, i32) {
    %c0_i32 = arith.constant 0 : i32
    %c0_i32_0 = arith.constant 0 : i32
    %c0_i32_1 = arith.constant 0 : i32
    return %c0_i32, %c0_i32_0 : i32, i32
  }
  func.func @transform_10(%arg0: i32) -> (i32, i32) {
    %c0_i32 = arith.constant 0 : i32
    %c0_i32_0 = arith.constant 0 : i32
    %c0_i32_1 = arith.constant 0 : i32
    return %c0_i32, %c0_i32_0 : i32, i32
  }
  func.func @transform_11(%arg0: i32) -> (i32, i32) {
    %c0_i32 = arith.constant 0 : i32
    %c0_i32_0 = arith.constant 0 : i32
    %c0_i32_1 = arith.constant 0 : i32
    return %c0_i32, %c0_i32_0 : i32, i32
  }
  func.func @transform_12(%arg0: i32) -> (i32, i32) {
    %c0_i32 = arith.constant 0 : i32
    %c0_i32_0 = arith.constant 0 : i32
    %c0_i32_1 = arith.constant 0 : i32
    return %c0_i32, %c0_i32_0 : i32, i32
  }
  func.func @transform_13(%arg0: i32) -> (i32, i32) {
    %c0_i32 = arith.constant 0 : i32
    %c0_i32_0 = arith.constant 0 : i32
    return %arg0, %c0_i32 : i32, i32
  }
}

</mosaic_0001>

<llo_original>
// kernel: tpu_custom_call.1
$region0: #{tpu_custom_call.1}
  #allocation0 [shape = 'u32[]', space=smem, size = 0x4, offset = 0x4, fixed_abs, tag = 'smem constant byte address 0x4 - core index']
  #allocation1 [shape = 'u32[72,128]{1,0:T(1,128)}', space=vmem, size = 0x9000, scoped, tag = 'internal scratch']
  %s0 = inlined_call_operand.hbm [shape: f32[8,128], index: 0, kind: input, shape index: {}]
  %s1 = inlined_call_operand.hbm [shape: f32[8,128], index: 1, kind: input, shape index: {}]
  %s2 = inlined_call_operand.hbm [shape: f32[8,128], index: 2, kind: input, shape index: {}]
  %s3 = inlined_call_operand.hbm [shape: f32[128,128], index: 3, kind: input, shape index: {}]
  %s4 = inlined_call_operand.vmem [shape: f32[1,128], index: 4, kind: input, shape index: {}]
  %s5 = inlined_call_operand.hbm [shape: f32[128,128], index: 5, kind: input, shape index: {}]
  %s6 = inlined_call_operand.vmem [shape: f32[1,128], index: 6, kind: input, shape index: {}]
  %s7 = inlined_call_operand.hbm [shape: f32[128,128], index: 7, kind: input, shape index: {}]
  %s8 = inlined_call_operand.hbm [shape: f32[128,128], index: 8, kind: input, shape index: {}]
  %s9 = inlined_call_operand.hbm [shape: f32[128,128], index: 9, kind: input, shape index: {}]
  %s10 = inlined_call_operand.vmem [shape: f32[1,128], index: 10, kind: input, shape index: {}]
  %s11 = inlined_call_operand.hbm [shape: f32[128,128], index: 11, kind: input, shape index: {}]
  %s12 = inlined_call_operand.vmem [shape: f32[1,128], index: 12, kind: input, shape index: {}]
  %s13 = inlined_call_operand.hbm [shape: f32[8,128], index: 13, kind: output, shape index: {}]
  %s14 = sld [smem:[#allocation0]]
  $region98: #{tpu_custom_call.1} parent=0
    _
  %s16 = ssub.s32 1, %s14
  %s17 = scalar_select 0, %s16, %s14
  $region1: #{tpu_custom_call.1} parent=0
    #allocation2 [shape = 'u8[4096]{0}', space=vmem, size = 0x1000, scoped, tag = 'input window, operand 0, single buffered']
    #allocation3 [shape = 's32[1]{0}', space=sflag, size = 0x4, scoped, tag = 'scoped memory for tpu_custom_call.1']
    #allocation4 [shape = 's32[1]{0}', space=sflag, size = 0x4, scoped, tag = 'scoped memory for tpu_custom_call.1']
    #allocation5 [shape = 'u8[4096]{0}', space=vmem, size = 0x1000, scoped, tag = 'input window, operand 1, single buffered']
    #allocation6 [shape = 's32[1]{0}', space=sflag, size = 0x4, scoped, tag = 'scoped memory for tpu_custom_call.1']
    #allocation7 [shape = 'u8[4096]{0}', space=vmem, size = 0x1000, scoped, tag = 'input window, operand 2, single buffered']
    #allocation8 [shape = 'u8[65536]{0}', space=vmem, size = 0x10000, scoped, tag = 'input window, operand 3, single buffered']
    #allocation9 [shape = 's32[1]{0}', space=sflag, size = 0x4, scoped, tag = 'scoped memory for tpu_custom_call.1']
    #allocation10 [shape = 'u8[65536]{0}', space=vmem, size = 0x10000, scoped, tag = 'input window, operand 5, single buffered']
    #allocation11 [shape = 'u8[65536]{0}', space=vmem, size = 0x10000, scoped, tag = 'input window, operand 7, single buffered']
    #allocation12 [shape = 's32[1]{0}', space=sflag, size = 0x4, scoped, tag = 'scoped memory for tpu_custom_call.1']
    #allocation13 [shape = 'u8[65536]{0}', space=vmem, size = 0x10000, scoped, tag = 'input window, operand 8, single buffered']
    #allocation14 [shape = 'u8[65536]{0}', space=vmem, size = 0x10000, scoped, tag = 'input window, operand 9, single buffered']
    #allocation15 [shape = 's32[1]{0}', space=sflag, size = 0x4, scoped, tag = 'scoped memory for tpu_custom_call.1']
    #allocation16 [shape = 'u8[65536]{0}', space=vmem, size = 0x10000, scoped, tag = 'input window, operand 11, single buffered']
    #allocation17 [shape = 'u8[4096]{0}', space=vmem, size = 0x1000, scoped, tag = 'output window, operand 0, single buffered']
    %18 = vsyncpa [#allocation3], 0
    %19 = vsyncpa [#allocation6], 0
    %20 = vsyncpa [#allocation9], 0
    %21 = vsyncpa [#allocation12], 0
    %22 = vsyncpa [#allocation15], 0
    %23 = vsyncpa [#allocation4], 0
    // Predicated region
    $region2: #{tpu_custom_call.1} parent=1 // pred_check
      _
    $region3: #{tpu_custom_call.1} parent=1 // pred_check_branch
      %25 = sbr.rel (0) target = $region5
    $region4: #{tpu_custom_call.1} parent=1 // pred_region
      %27 = vsyncadd [#allocation3], 0
      %s29 = sshll.u32 %s0, 4
      %s30 = int_to_ptr.hbm [resolvable:$true] %s29
      %s31 = sshll.u32 [#allocation2], 4
      %s32 = int_to_ptr.vmem [resolvable:$true] %s31
      %34 = dma.hbm_to_vmem [thread:$0]  %s30, 128, %s32, [#allocation3]
    $region5: #{tpu_custom_call.1} parent=1 // pred_fallthru
      _
    // Predicated region
    $region6: #{tpu_custom_call.1} parent=1 // pred_check
      _
    $region7: #{tpu_custom_call.1} parent=1 // pred_check_branch
      %36 = sbr.rel (0) target = $region9
    $region8: #{tpu_custom_call.1} parent=1 // pred_region
      %38 = vsyncadd [#allocation6], 0
      %s40 = sshll.u32 %s1, 4
      %s41 = int_to_ptr.hbm [resolvable:$true] %s40
      %s42 = sshll.u32 [#allocation5], 4
      %s43 = int_to_ptr.vmem [resolvable:$true] %s42
      %45 = dma.hbm_to_vmem [thread:$0]  %s41, 128, %s43, [#allocation6]
    $region9: #{tpu_custom_call.1} parent=1 // pred_fallthru
      _
    // Predicated region
    $region10: #{tpu_custom_call.1} parent=1 // pred_check
      _
    $region11: #{tpu_custom_call.1} parent=1 // pred_check_branch
      %47 = sbr.rel (0) target = $region13
    $region12: #{tpu_custom_call.1} parent=1 // pred_region
      %49 = vsyncadd [#allocation6], 0
      %s51 = sshll.u32 %s2, 4
      %s52 = int_to_ptr.hbm [resolvable:$true] %s51
      %s53 = sshll.u32 [#allocation7], 4
      %s54 = int_to_ptr.vmem [resolvable:$true] %s53
      %56 = dma.hbm_to_vmem [thread:$0]  %s52, 128, %s54, [#allocation6]
    $region13: #{tpu_custom_call.1} parent=1 // pred_fallthru
      _
    // Predicated region
    $region14: #{tpu_custom_call.1} parent=1 // pred_check
      _
    $region15: #{tpu_custom_call.1} parent=1 // pred_check_branch
      %58 = sbr.rel (0) target = $region17
    $region16: #{tpu_custom_call.1} parent=1 // pred_region
      %60 = vsyncadd [#allocation9], 0
      %s61 = sshll.u32 %s3, 4
      %s62 = int_to_ptr.hbm [resolvable:$true] %s61
      %s63 = sshll.u32 [#allocation8], 4
      %s64 = int_to_ptr.vmem [resolvable:$true] %s63
      %69 = dma.hbm_to_vmem [thread:$0]  %s62, 2048, %s64, [#allocation9], 128, 128, 8
    $region17: #{tpu_custom_call.1} parent=1 // pred_fallthru
      _
    // Predicated region
    $region18: #{tpu_custom_call.1} parent=1 // pred_check
      _
    $region19: #{tpu_custom_call.1} parent=1 // pred_check_branch
      %71 = sbr.rel (0) target = $region21
    $region20: #{tpu_custom_call.1} parent=1 // pred_region
      _
    $region21: #{tpu_custom_call.1} parent=1 // pred_fallthru
      _
    // Predicated region
    $region22: #{tpu_custom_call.1} parent=1 // pred_check
      _
    $region23: #{tpu_custom_call.1} parent=1 // pred_check_branch
      %73 = sbr.rel (0) target = $region25
    $region24: #{tpu_custom_call.1} parent=1 // pred_region
      %75 = vsyncadd [#allocation9], 0
      %s76 = sshll.u32 %s5, 4
      %s77 = int_to_ptr.hbm [resolvable:$true] %s76
      %s78 = sshll.u32 [#allocation10], 4
      %s79 = int_to_ptr.vmem [resolvable:$true] %s78
      %84 = dma.hbm_to_vmem [thread:$0]  %s77, 2048, %s79, [#allocation9], 128, 128, 8
    $region25: #{tpu_custom_call.1} parent=1 // pred_fallthru
      _
    // Predicated region
    $region26: #{tpu_custom_call.1} parent=1 // pred_check
      _
    $region27: #{tpu_custom_call.1} parent=1 // pred_check_branch
      %86 = sbr.rel (0) target = $region29
    $region28: #{tpu_custom_call.1} parent=1 // pred_region
      _
    $region29: #{tpu_custom_call.1} parent=1 // pred_fallthru
      _
    // Predicated region
    $region30: #{tpu_custom_call.1} parent=1 // pred_check
      _
    $region31: #{tpu_custom_call.1} parent=1 // pred_check_branch
      %88 = sbr.rel (0) target = $region33
    $region32: #{tpu_custom_call.1} parent=1 // pred_region
      %90 = vsyncadd [#allocation12], 0
      %s91 = sshll.u32 %s7, 4
      %s92 = int_to_ptr.hbm [resolvable:$true] %s91
      %s93 = sshll.u32 [#allocation11], 4
      %s94 = int_to_ptr.vmem [resolvable:$true] %s93
      %99 = dma.hbm_to_vmem [thread:$0]  %s92, 2048, %s94, [#allocation12], 128, 128, 8
    $region33: #{tpu_custom_call.1} parent=1 // pred_fallthru
      _
    // Predicated region
    $region34: #{tpu_custom_call.1} parent=1 // pred_check
      _
    $region35: #{tpu_custom_call.1} parent=1 // pred_check_branch
      %101 = sbr.rel (0) target = $region37
    $region36: #{tpu_custom_call.1} parent=1 // pred_region
      %103 = vsyncadd [#allocation12], 0
      %s104 = sshll.u32 %s8, 4
      %s105 = int_to_ptr.hbm [resolvable:$true] %s104
      %s106 = sshll.u32 [#allocation13], 4
      %s107 = int_to_ptr.vmem [resolvable:$true] %s106
      %112 = dma.hbm_to_vmem [thread:$0]  %s105, 2048, %s107, [#allocation12], 128, 128, 8
    $region37: #{tpu_custom_call.1} parent=1 // pred_fallthru
      _
    // Predicated region
    $region38: #{tpu_custom_call.1} parent=1 // pred_check
      _
    $region39: #{tpu_custom_call.1} parent=1 // pred_check_branch
      %114 = sbr.rel (0) target = $region41
    $region40: #{tpu_custom_call.1} parent=1 // pred_region
      %116 = vsyncadd [#allocation15], 0
      %s117 = sshll.u32 %s9, 4
      %s118 = int_to_ptr.hbm [resolvable:$true] %s117
      %s119 = sshll.u32 [#allocation14], 4
      %s120 = int_to_ptr.vmem [resolvable:$true] %s119
      %125 = dma.hbm_to_vmem [thread:$0]  %s118, 2048, %s120, [#allocation15], 128, 128, 8
    $region41: #{tpu_custom_call.1} parent=1 // pred_fallthru
      _
    // Predicated region
    $region42: #{tpu_custom_call.1} parent=1 // pred_check
      _
    $region43: #{tpu_custom_call.1} parent=1 // pred_check_branch
      %127 = sbr.rel (0) target = $region45
    $region44: #{tpu_custom_call.1} parent=1 // pred_region
      _
    $region45: #{tpu_custom_call.1} parent=1 // pred_fallthru
      _
    // Predicated region
    $region46: #{tpu_custom_call.1} parent=1 // pred_check
      _
    $region47: #{tpu_custom_call.1} parent=1 // pred_check_branch
      %129 = sbr.rel (0) target = $region49
    $region48: #{tpu_custom_call.1} parent=1 // pred_region
      %131 = vsyncadd [#allocation15], 0
      %s132 = sshll.u32 %s11, 4
      %s133 = int_to_ptr.hbm [resolvable:$true] %s132
      %s134 = sshll.u32 [#allocation16], 4
      %s135 = int_to_ptr.vmem [resolvable:$true] %s134
      %140 = dma.hbm_to_vmem [thread:$0]  %s133, 2048, %s135, [#allocation15], 128, 128, 8
    $region49: #{tpu_custom_call.1} parent=1 // pred_fallthru
      _
    // Predicated region
    $region50: #{tpu_custom_call.1} parent=1 // pred_check
      _
    $region51: #{tpu_custom_call.1} parent=1 // pred_check_branch
      %142 = sbr.rel (0) target = $region53
    $region52: #{tpu_custom_call.1} parent=1 // pred_region
      _
    $region53: #{tpu_custom_call.1} parent=1 // pred_fallthru
      _
    // Predicated region
    $region54: #{tpu_custom_call.1} parent=1 // pred_check
      _
    $region55: #{tpu_custom_call.1} parent=1 // pred_check_branch
      %144 = sbr.rel (0) target = $region57
    $region56: #{tpu_custom_call.1} parent=1 // pred_region
      %146 = dma.done [#allocation3], 128
    $region57: #{tpu_custom_call.1} parent=1 // pred_fallthru
      _
    // Predicated region
    $region58: #{tpu_custom_call.1} parent=1 // pred_check
      _
    $region59: #{tpu_custom_call.1} parent=1 // pred_check_branch
      %148 = sbr.rel (0) target = $region61
    $region60: #{tpu_custom_call.1} parent=1 // pred_region
      %150 = dma.done [#allocation6], 128
    $region61: #{tpu_custom_call.1} parent=1 // pred_fallthru
      _
    // Predicated region
    $region62: #{tpu_custom_call.1} parent=1 // pred_check
      _
    $region63: #{tpu_custom_call.1} parent=1 // pred_check_branch
      %152 = sbr.rel (0) target = $region65
    $region64: #{tpu_custom_call.1} parent=1 // pred_region
      %154 = dma.done [#allocation6], 128
    $region65: #{tpu_custom_call.1} parent=1 // pred_fallthru
      _
    // Predicated region
    $region66: #{tpu_custom_call.1} parent=1 // pred_check
      _
    $region67: #{tpu_custom_call.1} parent=1 // pred_check_branch
      %156 = sbr.rel (0) target = $region69
    $region68: #{tpu_custom_call.1} parent=1 // pred_region
      %158 = dma.done [#allocation9], 2048
    $region69: #{tpu_custom_call.1} parent=1 // pred_fallthru
      _
    // Predicated region
    $region70: #{tpu_custom_call.1} parent=1 // pred_check
      _
    $region71: #{tpu_custom_call.1} parent=1 // pred_check_branch
      %160 = sbr.rel (0) target = $region73
    $region72: #{tpu_custom_call.1} parent=1 // pred_region
      %162 = dma.done [#allocation9], 2048
    $region73: #{tpu_custom_call.1} parent=1 // pred_fallthru
      _
    // Predicated region
    $region74: #{tpu_custom_call.1} parent=1 // pred_check
      _
    $region75: #{tpu_custom_call.1} parent=1 // pred_check_branch
      %164 = sbr.rel (0) target = $region77
    $region76: #{tpu_custom_call.1} parent=1 // pred_region
      %166 = dma.done [#allocation12], 2048
    $region77: #{tpu_custom_call.1} parent=1 // pred_fallthru
      _
    // Predicated region
    $region78: #{tpu_custom_call.1} parent=1 // pred_check
      _
    $region79: #{tpu_custom_call.1} parent=1 // pred_check_branch
      %168 = sbr.rel (0) target = $region81
    $region80: #{tpu_custom_call.1} parent=1 // pred_region
      %170 = dma.done [#allocation12], 2048
    $region81: #{tpu_custom_call.1} parent=1 // pred_fallthru
      _
    // Predicated region
    $region82: #{tpu_custom_call.1} parent=1 // pred_check
      _
    $region83: #{tpu_custom_call.1} parent=1 // pred_check_branch
      %172 = sbr.rel (0) target = $region85
    $region84: #{tpu_custom_call.1} parent=1 // pred_region
      %174 = dma.done [#allocation15], 2048
    $region85: #{tpu_custom_call.1} parent=1 // pred_fallthru
      _
    // Predicated region
    $region86: #{tpu_custom_call.1} parent=1 // pred_check
      _
    $region87: #{tpu_custom_call.1} parent=1 // pred_check_branch
      %176 = sbr.rel (0) target = $region89
    $region88: #{tpu_custom_call.1} parent=1 // pred_region
      %178 = dma.done [#allocation15], 2048
    $region89: #{tpu_custom_call.1} parent=1 // pred_fallthru
      _
    %v179 = vld [vmem:[#allocation2] sm:$0xff]
    %v180 = vld [vmem:[#allocation5] sm:$0xff]
    %v181 = vld [vmem:[#allocation7] sm:$0xff]
    %v182 = vld [vmem:[#allocation8] sm:$0xff]
    %v183 = vld [vmem:[#allocation8 + $0x8] sm:$0xff]
    %v184 = vld [vmem:[#allocation8 + $0x10] sm:$0xff]
    %v185 = vld [vmem:[#allocation8 + $0x18] sm:$0xff]
    %v186 = vld [vmem:[#allocation8 + $0x20] sm:$0xff]
    %v187 = vld [vmem:[#allocation8 + $0x28] sm:$0xff]
    %v188 = vld [vmem:[#allocation8 + $0x30] sm:$0xff]
    %v189 = vld [vmem:[#allocation8 + $0x38] sm:$0xff]
    %v190 = vld [vmem:[#allocation8 + $0x40] sm:$0xff]
    %v191 = vld [vmem:[#allocation8 + $0x48] sm:$0xff]
    %v192 = vld [vmem:[#allocation8 + $0x50] sm:$0xff]
    %v193 = vld [vmem:[#allocation8 + $0x58] sm:$0xff]
    %v194 = vld [vmem:[#allocation8 + $0x60] sm:$0xff]
    %v195 = vld [vmem:[#allocation8 + $0x68] sm:$0xff]
    %v196 = vld [vmem:[#allocation8 + $0x70] sm:$0xff]
    %v197 = vld [vmem:[#allocation8 + $0x78] sm:$0xff]
    %v198 = vld [vmem:[%s4] sm:$0x1]
    %v200 = vperm.slane %v198, 0
    %202 = vmatpush.msra.mxu0 %v197
    %203 = vmatpush.msra.mxu0 %v196
    %204 = vmatpush.msra.mxu0 %v195
    %205 = vmatpush.msra.mxu0 %v194
    %206 = vmatpush.msra.mxu0 %v193
    %207 = vmatpush.msra.mxu0 %v192
    %208 = vmatpush.msra.mxu0 %v191
    %209 = vmatpush.msra.mxu0 %v190
    %210 = vmatpush.msra.mxu0 %v189
    %211 = vmatpush.msra.mxu0 %v188
    %212 = vmatpush.msra.mxu0 %v187
    %213 = vmatpush.msra.mxu0 %v186
    %214 = vmatpush.msra.mxu0 %v185
    %215 = vmatpush.msra.mxu0 %v184
    %216 = vmatpush.msra.mxu0 %v183
    %217 = vmatpush.msra.mxu0 %v182
    %218 = vmatmul.f32.gmra.mxu0 %v180
    %v219 = vpop.f32.mrf.mxu0
    %v220 = vadd.f32 %v200, %v219
    %221 = vdwg.mxu0
    %v222 = vmul.f32 %v220, 0.5
    %v223 = vmul.f32 %v220, 0.70710677
    %v224 = vmul.f32 %v223, %v223
    %v225 = vmin.f32 16.0, %v224
    %v226 = vmul.f32 %v225, 2.1237322e-06
    %v227 = vadd.f32 %v226, 0.00028619796
    %v228 = vmul.f32 %v225, %v227
    %v229 = vadd.f32 %v228, 0.0036580483
    %v230 = vmul.f32 %v225, %v229
    %v231 = vadd.f32 %v230, 0.05243302
    %v232 = vmul.f32 %v225, %v231
    %v233 = vadd.f32 %v232, 0.18741608
    %v234 = vmul.f32 %v225, %v233
    %v235 = vadd.f32 %v234, 1.1283791
    %v236 = vmul.f32 %v223, %v235
    %v237 = vmul.f32 %v225, 3.8918573e-05
    %v238 = vadd.f32 %v237, 0.001143296
    %v239 = vmul.f32 %v225, %v238
    %v240 = vadd.f32 %v239, 0.014752088
    %v241 = vmul.f32 %v225, %v240
    %v242 = vadd.f32 %v241, 0.112945676
    %v243 = vmul.f32 %v225, %v242
    %v244 = vadd.f32 %v243, 0.4994258
    %v245 = vmul.f32 %v225, %v244
    %v246 = vadd.f32 %v245, 1.0
    %v247 = vrcp.pop %v246
    %v248 = vmul.f32 %v246, %v247
    %v249 = vsub.f32 1.0, %v248
    %v250 = vmul.f32 %v247, %v249
    %v251 = vadd.f32 %v247, %v250
    %vm252 = vweird.f32 %v246
    %vm253 = vweird.f32 %v247
    %vm254 = vmor %vm252, %vm253
    %v255 = vsel %vm254, %v247, %v251
    %v256 = vand.u32 2147483647, %v246
    %vm257 = vcmp.eq.f32.partialorder %v256, 8.507059e+37
    %v258 = vand.u32 %v246, 2147483648
    %v259 = vor.u32 1.1754944e-38, %v258
    %v260 = vsel %vm257, %v259, %v255
    %v261 = vmul.f32 %v236, %v260
    %v262 = vmin.f32 %v261, 1.0
    %v263 = vmax.f32 %v262, -1.0
    %v264 = vadd.f32 %v263, 1.0
    %v265 = vmul.f32 %v222, %v264
    %v266 = vld [vmem:[#allocation10] sm:$0xff]
    %v267 = vld [vmem:[#allocation10 + $0x8] sm:$0xff]
    %v268 = vld [vmem:[#allocation10 + $0x10] sm:$0xff]
    %v269 = vld [vmem:[#allocation10 + $0x18] sm:$0xff]
    %v270 = vld [vmem:[#allocation10 + $0x20] sm:$0xff]
    %v271 = vld [vmem:[#allocation10 + $0x28] sm:$0xff]
    %v272 = vld [vmem:[#allocation10 + $0x30] sm:$0xff]
    %v273 = vld [vmem:[#allocation10 + $0x38] sm:$0xff]
    %v274 = vld [vmem:[#allocation10 + $0x40] sm:$0xff]
    %v275 = vld [vmem:[#allocation10 + $0x48] sm:$0xff]
    %v276 = vld [vmem:[#allocation10 + $0x50] sm:$0xff]
    %v277 = vld [vmem:[#allocation10 + $0x58] sm:$0xff]
    %v278 = vld [vmem:[#allocation10 + $0x60] sm:$0xff]
    %v279 = vld [vmem:[#allocation10 + $0x68] sm:$0xff]
    %v280 = vld [vmem:[#allocation10 + $0x70] sm:$0xff]
    %v281 = vld [vmem:[#allocation10 + $0x78] sm:$0xff]
    %v282 = vld [vmem:[%s6] sm:$0x1]
    %v284 = vperm.slane %v282, 0
    %286 = vmatpush.msra.mxu0 %v281
    %287 = vmatpush.msra.mxu0 %v280
    %288 = vmatpush.msra.mxu0 %v279
    %289 = vmatpush.msra.mxu0 %v278
    %290 = vmatpush.msra.mxu0 %v277
    %291 = vmatpush.msra.mxu0 %v276
    %292 = vmatpush.msra.mxu0 %v275
    %293 = vmatpush.msra.mxu0 %v274
    %294 = vmatpush.msra.mxu0 %v273
    %295 = vmatpush.msra.mxu0 %v272
    %296 = vmatpush.msra.mxu0 %v271
    %297 = vmatpush.msra.mxu0 %v270
    %298 = vmatpush.msra.mxu0 %v269
    %299 = vmatpush.msra.mxu0 %v268
    %300 = vmatpush.msra.mxu0 %v267
    %301 = vmatpush.msra.mxu0 %v266
    %302 = vmatmul.f32.gmra.mxu0 %v265
    %v303 = vpop.f32.mrf.mxu0
    %v304 = vadd.f32 %v284, %v303
    %305 = vdwg.mxu0
    %306 = vadd.xlane.f32.xlu0 %v179
    %v307 = vpop.xlane.xlu0 %306
    %308 = vadd.xlane.f32.xlu0 %v304
    %v309 = vpop.xlane.xlu0 %308
    %v310 = vadd.f32 %v307, %v309
    %311 = vadd.xlane.f32.xlu0 %v181
    %v312 = vpop.xlane.xlu0 %311
    %v313 = vadd.f32 %v310, %v312
    %v314 = vrcp.pop 96.0
    %v315 = vmul.f32 96.0, %v314
    %v316 = vsub.f32 1.0, %v315
    %v317 = vmul.f32 %v314, %v316
    %v318 = vadd.f32 %v314, %v317
    %vm319 = vweird.f32 %v314
    %v320 = vsel %vm319, %v314, %v318
    %v321 = vmul.f32 %v313, %v320
    %v322 = vsub.f32 %v179, %v321
    %v323 = vmul.f32 %v322, %v322
    %324 = vadd.xlane.f32.xlu0 %v323
    %v325 = vpop.xlane.xlu0 %324
    %v326 = vsub.f32 %v304, %v321
    %v327 = vmul.f32 %v326, %v326
    %328 = vadd.xlane.f32.xlu0 %v327
    %v329 = vpop.xlane.xlu0 %328
    %v330 = vadd.f32 %v325, %v329
    %v331 = vsub.f32 %v181, %v321
    %v332 = vmul.f32 %v331, %v331
    %333 = vadd.xlane.f32.xlu0 %v332
    %v334 = vpop.xlane.xlu0 %333
    %v335 = vadd.f32 %v330, %v334
    %v336 = vmul.f32 %v321, 288.0
    %v337 = vmul.f32 %v336, %v321
    %v338 = vsub.f32 %v335, %v337
    %v339 = vmul.f32 %v338, %v320
    %v340 = vadd.f32 %v339, 1e-05
    %v341 = vrsqrt.pop %v340
    %v342 = vmul.f32 %v341, %v340
    %v343 = vmul.f32 %v342, %v341
    %v344 = vmul.f32 0.5, %v343
    %v345 = vsub.f32 1.5, %v344
    %v346 = vmul.f32 %v341, %v345
    %vm347 = vweird.f32 %v340
    %vm348 = vweird.f32 %v341
    %vm349 = vmor %vm347, %vm348
    %v350 = vsel %vm349, %v341, %v346
    %v351 = vmul.f32 %v322, %v350
    %v352 = vld [vmem:[#allocation11] sm:$0xff]
    %v353 = vld [vmem:[#allocation11 + $0x8] sm:$0xff]
    %v354 = vld [vmem:[#allocation11 + $0x10] sm:$0xff]
    %v355 = vld [vmem:[#allocation11 + $0x18] sm:$0xff]
    %v356 = vld [vmem:[#allocation11 + $0x20] sm:$0xff]
    %v357 = vld [vmem:[#allocation11 + $0x28] sm:$0xff]
    %v358 = vld [vmem:[#allocation11 + $0x30] sm:$0xff]
    %v359 = vld [vmem:[#allocation11 + $0x38] sm:$0xff]
    %v360 = vld [vmem:[#allocation11 + $0x40] sm:$0xff]
    %v361 = vld [vmem:[#allocation11 + $0x48] sm:$0xff]
    %v362 = vld [vmem:[#allocation11 + $0x50] sm:$0xff]
    %v363 = vld [vmem:[#allocation11 + $0x58] sm:$0xff]
    %v364 = vld [vmem:[#allocation11 + $0x60] sm:$0xff]
    %v365 = vld [vmem:[#allocation11 + $0x68] sm:$0xff]
    %v366 = vld [vmem:[#allocation11 + $0x70] sm:$0xff]
    %v367 = vld [vmem:[#allocation11 + $0x78] sm:$0xff]
    %v368 = vmul.f32 %v326, %v350
    %v369 = vld [vmem:[#allocation13] sm:$0xff]
    %v370 = vld [vmem:[#allocation13 + $0x8] sm:$0xff]
    %v371 = vld [vmem:[#allocation13 + $0x10] sm:$0xff]
    %v372 = vld [vmem:[#allocation13 + $0x18] sm:$0xff]
    %v373 = vld [vmem:[#allocation13 + $0x20] sm:$0xff]
    %v374 = vld [vmem:[#allocation13 + $0x28] sm:$0xff]
    %v375 = vld [vmem:[#allocation13 + $0x30] sm:$0xff]
    %v376 = vld [vmem:[#allocation13 + $0x38] sm:$0xff]
    %v377 = vld [vmem:[#allocation13 + $0x40] sm:$0xff]
    %v378 = vld [vmem:[#allocation13 + $0x48] sm:$0xff]
    %v379 = vld [vmem:[#allocation13 + $0x50] sm:$0xff]
    %v380 = vld [vmem:[#allocation13 + $0x58] sm:$0xff]
    %v381 = vld [vmem:[#allocation13 + $0x60] sm:$0xff]
    %v382 = vld [vmem:[#allocation13 + $0x68] sm:$0xff]
    %v383 = vld [vmem:[#allocation13 + $0x70] sm:$0xff]
    %v384 = vld [vmem:[#allocation13 + $0x78] sm:$0xff]
    %385 = vmatpush.msra.mxu0 %v384
    %386 = vmatpush.msra.mxu0 %v383
    %387 = vmatpush.msra.mxu0 %v382
    %388 = vmatpush.msra.mxu0 %v381
    %389 = vmatpush.msra.mxu0 %v380
    %390 = vmatpush.msra.mxu0 %v379
    %391 = vmatpush.msra.mxu0 %v378
    %392 = vmatpush.msra.mxu0 %v377
    %393 = vmatpush.msra.mxu0 %v376
    %394 = vmatpush.msra.mxu0 %v375
    %395 = vmatpush.msra.mxu0 %v374
    %396 = vmatpush.msra.mxu0 %v373
    %397 = vmatpush.msra.mxu0 %v372
    %398 = vmatpush.msra.mxu0 %v371
    %399 = vmatpush.msra.mxu0 %v370
    %400 = vmatpush.msra.mxu0 %v369
    %401 = vmatmul.f32.gmra.mxu0 %v368
    %v402 = vpop.f32.mrf.mxu0
    %v403 = vadd.f32 0.0, %v402
    %404 = vdwg.mxu0
    %405 = vmatpush.msra.mxu0 %v367
    %406 = vmatpush.msra.mxu0 %v366
    %407 = vmatpush.msra.mxu0 %v365
    %408 = vmatpush.msra.mxu0 %v364
    %409 = vmatpush.msra.mxu0 %v363
    %410 = vmatpush.msra.mxu0 %v362
    %411 = vmatpush.msra.mxu0 %v361
    %412 = vmatpush.msra.mxu0 %v360
    %413 = vmatpush.msra.mxu0 %v359
    %414 = vmatpush.msra.mxu0 %v358
    %415 = vmatpush.msra.mxu0 %v357
    %416 = vmatpush.msra.mxu0 %v356
    %417 = vmatpush.msra.mxu0 %v355
    %418 = vmatpush.msra.mxu0 %v354
    %419 = vmatpush.msra.mxu0 %v353
    %420 = vmatpush.msra.mxu0 %v352
    %421 = vmatmul.f32.gmra.mxu0 %v351
    %v422 = vpop.f32.mrf.mxu0
    %v423 = vadd.f32 %v403, %v422
    %424 = vdwg.mxu0
    %v425 = vmul.f32 %v331, %v350
    %v426 = vld [vmem:[#allocation14] sm:$0xff]
    %v427 = vld [vmem:[#allocation14 + $0x8] sm:$0xff]
    %v428 = vld [vmem:[#allocation14 + $0x10] sm:$0xff]
    %v429 = vld [vmem:[#allocation14 + $0x18] sm:$0xff]
    %v430 = vld [vmem:[#allocation14 + $0x20] sm:$0xff]
    %v431 = vld [vmem:[#allocation14 + $0x28] sm:$0xff]
    %v432 = vld [vmem:[#allocation14 + $0x30] sm:$0xff]
    %v433 = vld [vmem:[#allocation14 + $0x38] sm:$0xff]
    %v434 = vld [vmem:[#allocation14 + $0x40] sm:$0xff]
    %v435 = vld [vmem:[#allocation14 + $0x48] sm:$0xff]
    %v436 = vld [vmem:[#allocation14 + $0x50] sm:$0xff]
    %v437 = vld [vmem:[#allocation14 + $0x58] sm:$0xff]
    %v438 = vld [vmem:[#allocation14 + $0x60] sm:$0xff]
    %v439 = vld [vmem:[#allocation14 + $0x68] sm:$0xff]
    %v440 = vld [vmem:[#allocation14 + $0x70] sm:$0xff]
    %v441 = vld [vmem:[#allocation14 + $0x78] sm:$0xff]
    %442 = vmatpush.msra.mxu0 %v441
    %443 = vmatpush.msra.mxu0 %v440
    %444 = vmatpush.msra.mxu0 %v439
    %445 = vmatpush.msra.mxu0 %v438
    %446 = vmatpush.msra.mxu0 %v437
    %447 = vmatpush.msra.mxu0 %v436
    %448 = vmatpush.msra.mxu0 %v435
    %449 = vmatpush.msra.mxu0 %v434
    %450 = vmatpush.msra.mxu0 %v433
    %451 = vmatpush.msra.mxu0 %v432
    %452 = vmatpush.msra.mxu0 %v431
    %453 = vmatpush.msra.mxu0 %v430
    %454 = vmatpush.msra.mxu0 %v429
    %455 = vmatpush.msra.mxu0 %v428
    %456 = vmatpush.msra.mxu0 %v427
    %457 = vmatpush.msra.mxu0 %v426
    %458 = vmatmul.f32.gmra.mxu0 %v425
    %v459 = vpop.f32.mrf.mxu0
    %v460 = vadd.f32 0.0, %v459
    %461 = vdwg.mxu0
    %v462 = vadd.f32 %v423, %v460
    %v463 = vld [vmem:[%s10] sm:$0x1]
    %v465 = vperm.slane %v463, 0
    %v467 = vadd.f32 %v462, %v465
    %v468 = vmax.f32 %v467, 0.0
    %469 = vadd.xlane.f32.xlu0 %v468
    %v470 = vpop.xlane.xlu0 %469
    %v471 = vrcp.pop 128.0
    %v472 = vmul.f32 128.0, %v471
    %v473 = vsub.f32 1.0, %v472
    %v474 = vmul.f32 %v471, %v473
    %v475 = vadd.f32 %v471, %v474
    %vm476 = vweird.f32 %v471
    %v477 = vsel %vm476, %v471, %v475
    %v478 = vmul.f32 %v470, %v477
    %v479 = vsub.f32 %v468, %v478
    %v480 = vmul.f32 %v479, %v479
    %481 = vadd.xlane.f32.xlu0 %v480
    %v482 = vpop.xlane.xlu0 %481
    %v483 = vmul.f32 %v478, 0.0
    %v484 = vmul.f32 %v483, %v478
    %v485 = vsub.f32 %v482, %v484
    %v486 = vmul.f32 %v485, %v477
    %v487 = vadd.f32 %v486, 1e-05
    %v488 = vrsqrt.pop %v487
    %v489 = vmul.f32 %v488, %v487
    %v490 = vmul.f32 %v489, %v488
    %v491 = vmul.f32 0.5, %v490
    %v492 = vsub.f32 1.5, %v491
    %v493 = vmul.f32 %v488, %v492
    %vm494 = vweird.f32 %v487
    %vm495 = vweird.f32 %v488
    %vm496 = vmor %vm494, %vm495
    %v497 = vsel %vm496, %v488, %v493
    %v498 = vmul.f32 %v479, %v497
    %v499 = vld [vmem:[#allocation16] sm:$0xff]
    %v500 = vld [vmem:[#allocation16 + $0x8] sm:$0xff]
    %v501 = vld [vmem:[#allocation16 + $0x10] sm:$0xff]
    %v502 = vld [vmem:[#allocation16 + $0x18] sm:$0xff]
    %v503 = vld [vmem:[#allocation16 + $0x20] sm:$0xff]
    %v504 = vld [vmem:[#allocation16 + $0x28] sm:$0xff]
    %v505 = vld [vmem:[#allocation16 + $0x30] sm:$0xff]
    %v506 = vld [vmem:[#allocation16 + $0x38] sm:$0xff]
    %v507 = vld [vmem:[#allocation16 + $0x40] sm:$0xff]
    %v508 = vld [vmem:[#allocation16 + $0x48] sm:$0xff]
    %v509 = vld [vmem:[#allocation16 + $0x50] sm:$0xff]
    %v510 = vld [vmem:[#allocation16 + $0x58] sm:$0xff]
    %v511 = vld [vmem:[#allocation16 + $0x60] sm:$0xff]
    %v512 = vld [vmem:[#allocation16 + $0x68] sm:$0xff]
    %v513 = vld [vmem:[#allocation16 + $0x70] sm:$0xff]
    %v514 = vld [vmem:[#allocation16 + $0x78] sm:$0xff]
    %v515 = vld [vmem:[%s12] sm:$0x1]
    %v517 = vperm.slane %v515, 0
    %519 = vmatpush.msra.mxu0 %v514
    %520 = vmatpush.msra.mxu0 %v513
    %521 = vmatpush.msra.mxu0 %v512
    %522 = vmatpush.msra.mxu0 %v511
    %523 = vmatpush.msra.mxu0 %v510
    %524 = vmatpush.msra.mxu0 %v509
    %525 = vmatpush.msra.mxu0 %v508
    %526 = vmatpush.msra.mxu0 %v507
    %527 = vmatpush.msra.mxu0 %v506
    %528 = vmatpush.msra.mxu0 %v505
    %529 = vmatpush.msra.mxu0 %v504
    %530 = vmatpush.msra.mxu0 %v503
    %531 = vmatpush.msra.mxu0 %v502
    %532 = vmatpush.msra.mxu0 %v501
    %533 = vmatpush.msra.mxu0 %v500
    %534 = vmatpush.msra.mxu0 %v499
    %535 = vmatmul.f32.gmra.mxu0 %v498
    %v536 = vpop.f32.mrf.mxu0
    %v537 = vadd.f32 %v517, %v536
    %538 = vdwg.mxu0
    %539 = vst [vmem:[#allocation17] sm:$0xff] %v537
    // Predicated region
    $region90: #{tpu_custom_call.1} parent=1 // pred_check
      _
    $region91: #{tpu_custom_call.1} parent=1 // pred_check_branch
      %541 = sbr.rel (0) target = $region93
    $region92: #{tpu_custom_call.1} parent=1 // pred_region
      %543 = vsyncadd [#allocation4], 0
      %s545 = sshll.u32 [#allocation17], 4
      %s546 = int_to_ptr.vmem [resolvable:$true] %s545
      %s547 = sshll.u32 %s13, 4
      %s548 = int_to_ptr.hbm [resolvable:$true] %s547
      %550 = dma.vmem_to_hbm [thread:$0]  %s546, 128, %s548, [#allocation4]
    $region93: #{tpu_custom_call.1} parent=1 // pred_fallthru
      _
    // Predicated region
    $region94: #{tpu_custom_call.1} parent=1 // pred_check
      _
    $region95: #{tpu_custom_call.1} parent=1 // pred_check_branch
      %552 = sbr.rel (0) target = $region97
    $region96: #{tpu_custom_call.1} parent=1 // pred_region
      %554 = dma.done [#allocation4], 128
    $region97: #{tpu_custom_call.1} parent=1 // pred_fallthru
      _
    %555 = vsyncpa [#allocation3], 1
    %556 = vsyncpa [#allocation6], 1
    %557 = vsyncpa [#allocation9], 1
    %558 = vsyncpa [#allocation12], 1
    %559 = vsyncpa [#allocation15], 1
    %560 = vsyncpa [#allocation4], 1

</llo_original>
